<compile_context>
chip_gen: v7x
topology: tpu7x:2x2x1
jax: 0.10.0
libtpu: 0.0.40
codegen_flags: <defaults>
</compile_context>

<pallas_src>
import functools

import jax
import jax.numpy as jnp
from jax.experimental import pallas as pl
from jax.experimental.pallas import tpu as pltpu

BN_EPS = 1e-5
LANE = 128


def _round_up(n, m):
    return ((n + m - 1) // m) * m


def _encoder_kernel(n_hidden, compute_dtype, x_ref, *refs):
    """Whole encoder forward in one kernel (all operands resident in VMEM).

    refs layout: [W_i, gammabeta_i] * n_hidden, W_head, b_head, out_ref
      W_i          : (in_dim_i, out_pad_i)  pre-transposed; out lane-padded
      gammabeta_i  : (2, out_pad_i)         row 0 = gamma, row 1 = beta
      W_head       : (in_pad, head_pad)     [Wm.T | Wv.T] lane-padded to 128
      b_head       : (1, head_pad)
      out_ref      : (batch, head_pad)      [means | log_vars | 0-pad]
    """
    h = x_ref[...].astype(jnp.float32)
    inv_n = 1.0 / h.shape[0]  # static batch size
    idx = 0
    for _ in range(n_hidden):
        w_ref, gb_ref = refs[idx], refs[idx + 1]
        idx += 2
        # Linear WITHOUT bias: a pre-BN bias cancels exactly against the
        # batch-mean subtraction in training-mode BatchNorm, so it is dropped.
        y = jnp.dot(h.astype(compute_dtype), w_ref[...],
                    preferred_element_type=jnp.float32)
        # One-pass BatchNorm1d (training mode), f32 stats:
        #   mu = E[y], var = max(E[y^2] - mu^2, 0)  (clamped: cancellation)
        # The two reductions are independent (shorter critical path than
        # mean -> diff -> diff*diff -> mean).
        s1 = jnp.sum(y, axis=0, keepdims=True)
        s2 = jnp.sum(y * y, axis=0, keepdims=True)
        mu = s1 * inv_n
        var = jnp.maximum(s2 * inv_n - mu * mu, 0.0)
        # Fold gamma into the rsqrt; normalize as a single fused mul-add.
        scale = gb_ref[0:1, :] * jax.lax.rsqrt(var + BN_EPS)
        shift = gb_ref[1:2, :] - mu * scale
        h = jnp.maximum(y * scale + shift, 0.0)  # BN + ReLU

    wh_ref, bh_ref, out_ref = refs[idx], refs[idx + 1], refs[idx + 2]
    # Fused means|log_vars head; head_pad is a multiple of 128 so this is a
    # single full-width (unmasked) store.
    out_ref[...] = (
        jnp.dot(h.astype(compute_dtype), wh_ref[...],
                preferred_element_type=jnp.float32)
        + bh_ref[...]
    )


def _padded_dims(layer_sizes):
    """Input dim stays unpadded (no wasted K work); hidden dims lane-padded."""
    return [layer_sizes[0]] + [_round_up(s, LANE) for s in layer_sizes[1:]]


def prepare_params(params, layer_sizes, latent_size,
                   compute_dtype=jnp.bfloat16):
    """One-time packing (outside the hot path): transpose weights to (in, out),
    fuse the two heads, pack gamma/beta, zero-pad output feature dims to 128,
    and store matmul weights in compute_dtype (bf16 by default)."""
    n_hidden = len(layer_sizes) - 1
    dims = _padded_dims(layer_sizes)
    head_pad = _round_up(2 * latent_size, LANE)

    args = []
    for i in range(n_hidden):
        in_s, out_s = layer_sizes[i], layer_sizes[i + 1]
        in_p, out_p = dims[i], dims[i + 1]
        w = jnp.zeros((in_p, out_p), compute_dtype)
        w = w.at[:in_s, :out_s].set(params[f"W{i}"].T.astype(compute_dtype))
        gb = jnp.zeros((2, out_p), jnp.float32)
        gb = gb.at[0, :out_s].set(params[f"gamma{i}"])
        gb = gb.at[1, :out_s].set(params[f"beta{i}"])
        args += [w, gb]

    in_s, in_p = layer_sizes[-1], dims[-1]
    w_head = jnp.zeros((in_p, head_pad), compute_dtype)
    w_head = w_head.at[:in_s, :latent_size].set(
        params["Wm"].T.astype(compute_dtype))
    w_head = w_head.at[:in_s, latent_size:2 * latent_size].set(
        params["Wv"].T.astype(compute_dtype))
    b_head = jnp.zeros((1, head_pad), jnp.float32)
    b_head = b_head.at[0, :latent_size].set(params["bm"])
    b_head = b_head.at[0, latent_size:2 * latent_size].set(params["bv"])
    args += [w_head, b_head]
    return tuple(args)


def encoder_forward(x, packed, layer_sizes, latent_size,
                    compute_dtype=jnp.bfloat16):
    """packed: output of prepare_params (already transposed / fused / padded).

    TODO(synk): training loops calling this repeatedly should keep the packed
    weights resident across calls (cross-pallas_call prefetch); at these sizes
    the per-call cost is dominated by re-DMAing ~100-200 KiB of weights.
    """
    n_hidden = len(layer_sizes) - 1
    batch, _ = x.shape
    dims = _padded_dims(layer_sizes)
    head_pad = _round_up(2 * latent_size, LANE)

    # Rough cost hint for the XLA scheduler around the custom call.
    flops = 0
    prev = dims[0]
    for d in dims[1:]:
        flops += 2 * batch * prev * d + 8 * batch * d   # matmul + BN/ReLU
        prev = d
    flops += 2 * batch * prev * head_pad + batch * head_pad
    transcendentals = sum(dims[1:])                      # one rsqrt per BN feature
    bytes_accessed = (x.size * x.dtype.itemsize
                      + sum(a.size * a.dtype.itemsize for a in packed)
                      + batch * head_pad * 4)

    vmem_spec = pl.BlockSpec(memory_space=pltpu.MemorySpace.VMEM)
    kernel = functools.partial(_encoder_kernel, n_hidden, compute_dtype)

    out = pl.pallas_call(
        kernel,
        out_shape=jax.ShapeDtypeStruct((batch, head_pad), jnp.float32),
        in_specs=[vmem_spec] * (1 + len(packed)),
        out_specs=vmem_spec,
        compiler_params=pltpu.CompilerParams(
            # Needed on v5e (16 MiB scoped default); leaves headroom under
            # v7x's 64 MiB physical VMEM.  Raise toward ~100 MiB on v5e/v6e
            # only for the future large-batch all-resident variant.
            vmem_limit_bytes=48 * 1024 * 1024,
        ),
        cost_estimate=pl.CostEstimate(
            flops=flops,
            transcendentals=transcendentals,
            bytes_accessed=bytes_accessed,
        ),
    )(x, *packed)

    means = out[:, :latent_size]
    log_vars = out[:, latent_size:2 * latent_size]
    return means, log_vars


def _reference_forward(x, params, layer_sizes, latent_size):
    """Pure-JAX reference mirroring the PyTorch forward (training-mode BN)."""
    n_hidden = len(layer_sizes) - 1
    h = x
    for i in range(n_hidden):
        y = h @ params[f"W{i}"].T + params[f"b{i}"]
        mu = jnp.mean(y, axis=0, keepdims=True)
        var = jnp.mean((y - mu) ** 2, axis=0, keepdims=True)
        y = (y - mu) / jnp.sqrt(var + BN_EPS)
        y = y * params[f"gamma{i}"] + params[f"beta{i}"]
        h = jnp.maximum(y, 0.0)
    means = h @ params["Wm"].T + params["bm"]
    log_vars = h @ params["Wv"].T + params["bv"]
    return means, log_vars


def _init_params(key, layer_sizes, latent_size):
    """Deterministic synthetic init (uniform, PyTorch Linear-style fan-in scale)."""
    params = {}
    keys = jax.random.split(key, 2 * (len(layer_sizes) - 1) + 4)
    k = 0
    for i, (in_s, out_s) in enumerate(zip(layer_sizes[:-1], layer_sizes[1:])):
        bound = 1.0 / jnp.sqrt(in_s)
        params[f"W{i}"] = jax.random.uniform(keys[k], (out_s, in_s), jnp.float32, -bound, bound); k += 1
        params[f"b{i}"] = jax.random.uniform(keys[k], (out_s,), jnp.float32, -bound, bound); k += 1
        params[f"gamma{i}"] = jnp.ones((out_s,), jnp.float32)   # BatchNorm1d default init
        params[f"beta{i}"] = jnp.zeros((out_s,), jnp.float32)
    in_s = layer_sizes[-1]
    bound = 1.0 / jnp.sqrt(in_s)
    params["Wm"] = jax.random.uniform(keys[k], (latent_size, in_s), jnp.float32, -bound, bound); k += 1
    params["bm"] = jax.random.uniform(keys[k], (latent_size,), jnp.float32, -bound, bound); k += 1
    params["Wv"] = jax.random.uniform(keys[k], (latent_size, in_s), jnp.float32, -bound, bound); k += 1
    params["bv"] = jax.random.uniform(keys[k], (latent_size,), jnp.float32, -bound, bound); k += 1
    return params


if __name__ == "__main__":
    layer_sizes = [32, 64, 32]   # two hidden Linear+BN+ReLU blocks
    latent_size = 8
    batch = 8                    # multiple of 8: aligned f32 sublane reductions

    key = jax.random.PRNGKey(0)
    k_x, k_p = jax.random.split(key)
    x = jax.random.normal(k_x, (batch, layer_sizes[0]), jnp.float32)
    params = _init_params(k_p, layer_sizes, latent_size)

    # --- f32 matmul path: tight numerical check against the reference. -----
    packed_f32 = prepare_params(params, layer_sizes, latent_size,
                                compute_dtype=jnp.float32)
    fwd_f32 = jax.jit(functools.partial(encoder_forward,
                                        layer_sizes=layer_sizes,
                                        latent_size=latent_size,
                                        compute_dtype=jnp.float32))
    means, log_vars = fwd_f32(x, packed_f32)
    jax.block_until_ready((means, log_vars))

    ref_means, ref_log_vars = _reference_forward(x, params, layer_sizes, latent_size)
    assert jnp.allclose(means, ref_means, atol=1e-4, rtol=1e-4), "means mismatch (f32)"
    assert jnp.allclose(log_vars, ref_log_vars, atol=1e-4, rtol=1e-4), "log_vars mismatch (f32)"

    # --- bf16 matmul path (default; MXU-friendly on v6e/v7x, weight bytes
    #     halved).  BN stats / elementwise stay f32; loose tolerance. --------
    packed_bf16 = prepare_params(params, layer_sizes, latent_size)  # bf16 default
    fwd_bf16 = jax.jit(functools.partial(encoder_forward,
                                         layer_sizes=layer_sizes,
                                         latent_size=latent_size))
    means_bf, log_vars_bf = fwd_bf16(x, packed_bf16)
    jax.block_until_ready((means_bf, log_vars_bf))
    assert jnp.allclose(means_bf, ref_means, atol=1e-1, rtol=1e-1), "means mismatch (bf16)"
    assert jnp.allclose(log_vars_bf, ref_log_vars, atol=1e-1, rtol=1e-1), "log_vars mismatch (bf16)"

    print("KERNEL_OK")
</pallas_src>

<mosaic_0001>
module attributes {stable_mosaic.version = 11 : i64} {
  func.func @_encoder_kernel(%arg0: memref<8x32xf32, #tpu.memory_space<vmem>>, %arg1: memref<32x128xf32, #tpu.memory_space<vmem>>, %arg2: memref<2x128xf32, #tpu.memory_space<vmem>>, %arg3: memref<128x128xf32, #tpu.memory_space<vmem>>, %arg4: memref<2x128xf32, #tpu.memory_space<vmem>>, %arg5: memref<128x128xf32, #tpu.memory_space<vmem>>, %arg6: memref<1x128xf32, #tpu.memory_space<vmem>>, %arg7: memref<8x128xf32, #tpu.memory_space<vmem>>) attributes {dimension_semantics = [], scalar_prefetch = 0 : i64, scratch_operands = 0 : i64, tpu.core_type = #tpu.core_type<tc>} {
    %c0 = arith.constant 0 : index
    %c0_0 = arith.constant 0 : index
    %0 = vector.load %arg0[%c0, %c0_0] : memref<8x32xf32, #tpu.memory_space<vmem>>, vector<8x32xf32>
    %c0_1 = arith.constant 0 : index
    %c0_2 = arith.constant 0 : index
    %1 = vector.load %arg1[%c0_1, %c0_2] : memref<32x128xf32, #tpu.memory_space<vmem>>, vector<32x128xf32>
    %cst = arith.constant dense<0.000000e+00> : vector<8x128xf32>
    %2 = tpu.matmul %0, %1, %cst {dimension_numbers = #tpu.dot_dimension_numbers<[1], [0], [0], [1], [0, 0, 1, 1], [], []>} : vector<8x32xf32>, vector<32x128xf32>, vector<8x128xf32> -> vector<8x128xf32>
    %cst_3 = arith.constant dense<0.000000e+00> : vector<128xf32>
    %3 = vector.multi_reduction <add>, %2, %cst_3 [0] : vector<8x128xf32> to vector<128xf32>
    %4 = vector.shape_cast %3 : vector<128xf32> to vector<1x128xf32>
    %5 = arith.mulf %2, %2 : vector<8x128xf32>
    %cst_4 = arith.constant dense<0.000000e+00> : vector<128xf32>
    %6 = vector.multi_reduction <add>, %5, %cst_4 [0] : vector<8x128xf32> to vector<128xf32>
    %7 = vector.shape_cast %6 : vector<128xf32> to vector<1x128xf32>
    %cst_5 = arith.constant 1.250000e-01 : f32
    %8 = vector.broadcast %cst_5 : f32 to vector<1x128xf32>
    %9 = arith.mulf %4, %8 : vector<1x128xf32>
    %cst_6 = arith.constant 1.250000e-01 : f32
    %10 = vector.broadcast %cst_6 : f32 to vector<1x128xf32>
    %11 = arith.mulf %7, %10 : vector<1x128xf32>
    %12 = arith.mulf %9, %9 : vector<1x128xf32>
    %13 = arith.subf %11, %12 : vector<1x128xf32>
    %cst_7 = arith.constant 0.000000e+00 : f32
    %14 = vector.broadcast %cst_7 : f32 to vector<1x128xf32>
    %15 = arith.maximumf %13, %14 : vector<1x128xf32>
    %c0_8 = arith.constant 0 : index
    %c0_9 = arith.constant 0 : index
    %16 = vector.load %arg2[%c0_8, %c0_9] : memref<2x128xf32, #tpu.memory_space<vmem>>, vector<1x128xf32>
    %cst_10 = arith.constant 9.99999974E-6 : f32
    %17 = vector.broadcast %cst_10 : f32 to vector<1x128xf32>
    %18 = arith.addf %15, %17 : vector<1x128xf32>
    %19 = math.rsqrt %18 : vector<1x128xf32>
    %20 = arith.mulf %16, %19 : vector<1x128xf32>
    %c1 = arith.constant 1 : index
    %c0_11 = arith.constant 0 : index
    %21 = vector.load %arg2[%c1, %c0_11] : memref<2x128xf32, #tpu.memory_space<vmem>>, vector<1x128xf32>
    %22 = arith.mulf %9, %20 : vector<1x128xf32>
    %23 = arith.subf %21, %22 : vector<1x128xf32>
    %24 = vector.broadcast %20 : vector<1x128xf32> to vector<8x128xf32>
    %25 = arith.mulf %2, %24 : vector<8x128xf32>
    %26 = vector.broadcast %23 : vector<1x128xf32> to vector<8x128xf32>
    %27 = arith.addf %25, %26 : vector<8x128xf32>
    %cst_12 = arith.constant 0.000000e+00 : f32
    %28 = vector.broadcast %cst_12 : f32 to vector<8x128xf32>
    %29 = arith.maximumf %27, %28 : vector<8x128xf32>
    %c0_13 = arith.constant 0 : index
    %c0_14 = arith.constant 0 : index
    %30 = vector.load %arg3[%c0_13, %c0_14] : memref<128x128xf32, #tpu.memory_space<vmem>>, vector<128x128xf32>
    %cst_15 = arith.constant dense<0.000000e+00> : vector<8x128xf32>
    %31 = tpu.matmul %29, %30, %cst_15 {dimension_numbers = #tpu.dot_dimension_numbers<[1], [0], [0], [1], [0, 0, 1, 1], [], []>} : vector<8x128xf32>, vector<128x128xf32>, vector<8x128xf32> -> vector<8x128xf32>
    %cst_16 = arith.constant dense<0.000000e+00> : vector<128xf32>
    %32 = vector.multi_reduction <add>, %31, %cst_16 [0] : vector<8x128xf32> to vector<128xf32>
    %33 = vector.shape_cast %32 : vector<128xf32> to vector<1x128xf32>
    %34 = arith.mulf %31, %31 : vector<8x128xf32>
    %cst_17 = arith.constant dense<0.000000e+00> : vector<128xf32>
    %35 = vector.multi_reduction <add>, %34, %cst_17 [0] : vector<8x128xf32> to vector<128xf32>
    %36 = vector.shape_cast %35 : vector<128xf32> to vector<1x128xf32>
    %cst_18 = arith.constant 1.250000e-01 : f32
    %37 = vector.broadcast %cst_18 : f32 to vector<1x128xf32>
    %38 = arith.mulf %33, %37 : vector<1x128xf32>
    %cst_19 = arith.constant 1.250000e-01 : f32
    %39 = vector.broadcast %cst_19 : f32 to vector<1x128xf32>
    %40 = arith.mulf %36, %39 : vector<1x128xf32>
    %41 = arith.mulf %38, %38 : vector<1x128xf32>
    %42 = arith.subf %40, %41 : vector<1x128xf32>
    %cst_20 = arith.constant 0.000000e+00 : f32
    %43 = vector.broadcast %cst_20 : f32 to vector<1x128xf32>
    %44 = arith.maximumf %42, %43 : vector<1x128xf32>
    %c0_21 = arith.constant 0 : index
    %c0_22 = arith.constant 0 : index
    %45 = vector.load %arg4[%c0_21, %c0_22] : memref<2x128xf32, #tpu.memory_space<vmem>>, vector<1x128xf32>
    %cst_23 = arith.constant 9.99999974E-6 : f32
    %46 = vector.broadcast %cst_23 : f32 to vector<1x128xf32>
    %47 = arith.addf %44, %46 : vector<1x128xf32>
    %48 = math.rsqrt %47 : vector<1x128xf32>
    %49 = arith.mulf %45, %48 : vector<1x128xf32>
    %c1_24 = arith.constant 1 : index
    %c0_25 = arith.constant 0 : index
    %50 = vector.load %arg4[%c1_24, %c0_25] : memref<2x128xf32, #tpu.memory_space<vmem>>, vector<1x128xf32>
    %51 = arith.mulf %38, %49 : vector<1x128xf32>
    %52 = arith.subf %50, %51 : vector<1x128xf32>
    %53 = vector.broadcast %49 : vector<1x128xf32> to vector<8x128xf32>
    %54 = arith.mulf %31, %53 : vector<8x128xf32>
    %55 = vector.broadcast %52 : vector<1x128xf32> to vector<8x128xf32>
    %56 = arith.addf %54, %55 : vector<8x128xf32>
    %cst_26 = arith.constant 0.000000e+00 : f32
    %57 = vector.broadcast %cst_26 : f32 to vector<8x128xf32>
    %58 = arith.maximumf %56, %57 : vector<8x128xf32>
    %c0_27 = arith.constant 0 : index
    %c0_28 = arith.constant 0 : index
    %59 = vector.load %arg5[%c0_27, %c0_28] : memref<128x128xf32, #tpu.memory_space<vmem>>, vector<128x128xf32>
    %cst_29 = arith.constant dense<0.000000e+00> : vector<8x128xf32>
    %60 = tpu.matmul %58, %59, %cst_29 {dimension_numbers = #tpu.dot_dimension_numbers<[1], [0], [0], [1], [0, 0, 1, 1], [], []>} : vector<8x128xf32>, vector<128x128xf32>, vector<8x128xf32> -> vector<8x128xf32>
    %c0_30 = arith.constant 0 : index
    %c0_31 = arith.constant 0 : index
    %61 = vector.load %arg6[%c0_30, %c0_31] : memref<1x128xf32, #tpu.memory_space<vmem>>, vector<1x128xf32>
    %62 = vector.broadcast %61 : vector<1x128xf32> to vector<8x128xf32>
    %63 = arith.addf %60, %62 : vector<8x128xf32>
    %c0_32 = arith.constant 0 : index
    %c0_33 = arith.constant 0 : index
    %64 = vector.load %arg7[%c0_32, %c0_33] : memref<8x128xf32, #tpu.memory_space<vmem>>, vector<8x128xf32>
    tpu.vector_store %arg7[%c0_32, %c0_33], %63 {strides = array<i32>} : memref<8x128xf32, #tpu.memory_space<vmem>>, vector<8x128xf32>,
    return
  }
}

</mosaic_0001>

<llo_original>
// kernel: encoder_forward.1
$region0: #{encoder_forward.1}
  #allocation0 [shape = 'u32[]', space=smem, size = 0x4, offset = 0x4, fixed_abs, tag = 'smem constant byte address 0x4 - core index']
  #allocation1 [shape = 'u32[144,128]{1,0:T(1,128)}', space=vmem, size = 0x12000, scoped, tag = 'internal scratch']
  %s0 = inlined_call_operand.hbm [shape: f32[8,32], index: 0, kind: input, shape index: {}]
  %s1 = inlined_call_operand.hbm [shape: f32[32,128], index: 1, kind: input, shape index: {}]
  %s2 = inlined_call_operand.vmem [shape: f32[2,128], index: 2, kind: input, shape index: {}]
  %s3 = inlined_call_operand.hbm [shape: f32[128,128], index: 3, kind: input, shape index: {}]
  %s4 = inlined_call_operand.vmem [shape: f32[2,128], index: 4, kind: input, shape index: {}]
  %s5 = inlined_call_operand.hbm [shape: f32[128,128], index: 5, kind: input, shape index: {}]
  %s6 = inlined_call_operand.vmem [shape: f32[1,128], index: 6, kind: input, shape index: {}]
  %s7 = inlined_call_operand.vmem [shape: f32[8,128], index: 7, kind: output, shape index: {}]
  %s8 = sld [smem:[#allocation0]]
  $region54: #{encoder_forward.1} parent=0
    _
  %s10 = ssub.s32 1, %s8
  %s11 = scalar_select 0, %s10, %s8
  $region1: #{encoder_forward.1} parent=0
    #allocation2 [shape = 'u8[4096]{0}', space=vmem, size = 0x1000, scoped, tag = 'input window, operand 0, single buffered']
    #allocation3 [shape = 's32[1]{0}', space=sflag, size = 0x4, scoped, tag = 'scoped memory for encoder_forward.1']
    #allocation4 [shape = 'u8[16384]{0}', space=vmem, size = 0x4000, scoped, tag = 'input window, operand 1, single buffered']
    #allocation5 [shape = 's32[1]{0}', space=sflag, size = 0x4, scoped, tag = 'scoped memory for encoder_forward.1']
    #allocation6 [shape = 'u8[65536]{0}', space=vmem, size = 0x10000, scoped, tag = 'input window, operand 3, single buffered']
    #allocation7 [shape = 'u8[65536]{0}', space=vmem, size = 0x10000, scoped, tag = 'input window, operand 5, single buffered']
    #allocation8 [shape = 's32[1]{0}', space=sflag, size = 0x4, scoped, tag = 'scoped memory for encoder_forward.1']
    %12 = vsyncpa [#allocation3], 0
    %13 = vsyncpa [#allocation5], 0
    %14 = vsyncpa [#allocation8], 0
    // Predicated region
    $region2: #{encoder_forward.1} parent=1 // pred_check
      _
    $region3: #{encoder_forward.1} parent=1 // pred_check_branch
      %16 = sbr.rel (0) target = $region5
    $region4: #{encoder_forward.1} parent=1 // pred_region
      %s18 = ssub.s32 128, 128
      %19 = vsyncadd [#allocation3], %s18
      %s21 = sshll.u32 [#allocation2], 4
      %s22 = int_to_ptr.vmem [resolvable:$true] %s21
      %24 = dma.hbm_to_vmem [thread:$0]  %s0, 128, %s22, [#allocation3]
    $region5: #{encoder_forward.1} parent=1 // pred_fallthru
      _
    // Predicated region
    $region6: #{encoder_forward.1} parent=1 // pred_check
      _
    $region7: #{encoder_forward.1} parent=1 // pred_check_branch
      %26 = sbr.rel (0) target = $region9
    $region8: #{encoder_forward.1} parent=1 // pred_region
      %s28 = ssub.s32 512, 512
      %29 = vsyncadd [#allocation5], %s28
      %s30 = sshll.u32 [#allocation4], 4
      %s31 = int_to_ptr.vmem [resolvable:$true] %s30
      %36 = dma.hbm_to_vmem [thread:$0]  %s1, 512, %s31, [#allocation5], 128, 128, 8
    $region9: #{encoder_forward.1} parent=1 // pred_fallthru
      _
    // Predicated region
    $region10: #{encoder_forward.1} parent=1 // pred_check
      _
    $region11: #{encoder_forward.1} parent=1 // pred_check_branch
      %38 = sbr.rel (0) target = $region13
    $region12: #{encoder_forward.1} parent=1 // pred_region
      _
    $region13: #{encoder_forward.1} parent=1 // pred_fallthru
      _
    // Predicated region
    $region14: #{encoder_forward.1} parent=1 // pred_check
      _
    $region15: #{encoder_forward.1} parent=1 // pred_check_branch
      %40 = sbr.rel (0) target = $region17
    $region16: #{encoder_forward.1} parent=1 // pred_region
      %s42 = ssub.s32 2048, 2048
      %43 = vsyncadd [#allocation5], %s42
      %s44 = sshll.u32 [#allocation6], 4
      %s45 = int_to_ptr.vmem [resolvable:$true] %s44
      %50 = dma.hbm_to_vmem [thread:$0]  %s3, 2048, %s45, [#allocation5], 128, 128, 8
    $region17: #{encoder_forward.1} parent=1 // pred_fallthru
      _
    // Predicated region
    $region18: #{encoder_forward.1} parent=1 // pred_check
      _
    $region19: #{encoder_forward.1} parent=1 // pred_check_branch
      %52 = sbr.rel (0) target = $region21
    $region20: #{encoder_forward.1} parent=1 // pred_region
      _
    $region21: #{encoder_forward.1} parent=1 // pred_fallthru
      _
    // Predicated region
    $region22: #{encoder_forward.1} parent=1 // pred_check
      _
    $region23: #{encoder_forward.1} parent=1 // pred_check_branch
      %54 = sbr.rel (0) target = $region25
    $region24: #{encoder_forward.1} parent=1 // pred_region
      %s56 = ssub.s32 2048, 2048
      %57 = vsyncadd [#allocation8], %s56
      %s58 = sshll.u32 [#allocation7], 4
      %s59 = int_to_ptr.vmem [resolvable:$true] %s58
      %64 = dma.hbm_to_vmem [thread:$0]  %s5, 2048, %s59, [#allocation8], 128, 128, 8
    $region25: #{encoder_forward.1} parent=1 // pred_fallthru
      _
    // Predicated region
    $region26: #{encoder_forward.1} parent=1 // pred_check
      _
    $region27: #{encoder_forward.1} parent=1 // pred_check_branch
      %66 = sbr.rel (0) target = $region29
    $region28: #{encoder_forward.1} parent=1 // pred_region
      _
    $region29: #{encoder_forward.1} parent=1 // pred_fallthru
      _
    // Predicated region
    $region30: #{encoder_forward.1} parent=1 // pred_check
      _
    $region31: #{encoder_forward.1} parent=1 // pred_check_branch
      %68 = sbr.rel (0) target = $region33
    $region32: #{encoder_forward.1} parent=1 // pred_region
      %69 = dma.done [#allocation3], 128
    $region33: #{encoder_forward.1} parent=1 // pred_fallthru
      _
    // Predicated region
    $region34: #{encoder_forward.1} parent=1 // pred_check
      _
    $region35: #{encoder_forward.1} parent=1 // pred_check_branch
      %71 = sbr.rel (0) target = $region37
    $region36: #{encoder_forward.1} parent=1 // pred_region
      %72 = dma.done [#allocation5], 512
    $region37: #{encoder_forward.1} parent=1 // pred_fallthru
      _
    // Predicated region
    $region38: #{encoder_forward.1} parent=1 // pred_check
      _
    $region39: #{encoder_forward.1} parent=1 // pred_check_branch
      %74 = sbr.rel (0) target = $region41
    $region40: #{encoder_forward.1} parent=1 // pred_region
      %75 = dma.done [#allocation5], 2048
    $region41: #{encoder_forward.1} parent=1 // pred_fallthru
      _
    // Predicated region
    $region42: #{encoder_forward.1} parent=1 // pred_check
      _
    $region43: #{encoder_forward.1} parent=1 // pred_check_branch
      %77 = sbr.rel (0) target = $region45
    $region44: #{encoder_forward.1} parent=1 // pred_region
      %78 = dma.done [#allocation8], 2048
    $region45: #{encoder_forward.1} parent=1 // pred_fallthru
      _
    %v79 = vld [vmem:[#allocation2] sm:$0xff]
    %v80 = vld [vmem:[#allocation4] sm:$0xff]
    %v81 = vld [vmem:[#allocation4 + $0x8] sm:$0xff]
    %v82 = vld [vmem:[#allocation4 + $0x10] sm:$0xff]
    %v83 = vld [vmem:[#allocation4 + $0x18] sm:$0xff]
    %vm84 = vcmask 261120
    %v86 = vsel %vm84, %v79, 0
    %88 = vmatprep.subr.mxu0 0.0
    %89 = vmatpush1.msra.mxu0 %v80
    %90 = vmatprep.subr.mxu0 0.0
    %91 = vmatpush1.msra.mxu0 %v81
    %92 = vmatprep.subr.mxu0 0.0
    %93 = vmatpush1.msra.mxu0 %v82
    %94 = vmatprep.subr.mxu0 0.0
    %95 = vmatpush1.msra.mxu0 %v83
    %96 = vmatprep.subr.mxu0 0.0
    %97 = vmatpush1.msra.mxu0 0.0
    %98 = vmatprep.subr.mxu0 0.0
    %99 = vmatpush1.msra.mxu0 0.0
    %100 = vmatprep.subr.mxu0 0.0
    %101 = vmatpush1.msra.mxu0 0.0
    %102 = vmatprep.subr.mxu0 0.0
    %103 = vmatpush1.msra.mxu0 0.0
    %104 = vmatprep.subr.mxu0 0.0
    %105 = vmatpush1.msra.mxu0 0.0
    %106 = vmatprep.subr.mxu0 0.0
    %107 = vmatpush1.msra.mxu0 0.0
    %108 = vmatprep.subr.mxu0 0.0
    %109 = vmatpush1.msra.mxu0 0.0
    %110 = vmatprep.subr.mxu0 0.0
    %111 = vmatpush1.msra.mxu0 0.0
    %112 = vmatprep.subr.mxu0 0.0
    %113 = vmatpush1.msra.mxu0 0.0
    %114 = vmatprep.subr.mxu0 0.0
    %115 = vmatpush1.msra.mxu0 0.0
    %116 = vmatprep.subr.mxu0 0.0
    %117 = vmatpush1.msra.mxu0 0.0
    %118 = vmatprep.subr.mxu0 0.0
    %119 = vmatpush1.msra.mxu0 0.0
    %120 = vmatprep.subr.mxu0 0.0
    %121 = vmatpush1.msra.mxu0 0.0
    %122 = vmatprep.subr.mxu0 0.0
    %123 = vmatpush1.msra.mxu0 0.0
    %124 = vmatprep.subr.mxu0 0.0
    %125 = vmatpush1.msra.mxu0 0.0
    %126 = vmatprep.subr.mxu0 0.0
    %127 = vmatpush1.msra.mxu0 0.0
    %128 = vmatprep.subr.mxu0 0.0
    %129 = vmatpush1.msra.mxu0 0.0
    %130 = vmatprep.subr.mxu0 0.0
    %131 = vmatpush1.msra.mxu0 0.0
    %132 = vmatprep.subr.mxu0 0.0
    %133 = vmatpush1.msra.mxu0 0.0
    %134 = vmatprep.subr.mxu0 0.0
    %135 = vmatpush1.msra.mxu0 0.0
    %136 = vmatprep.subr.mxu0 0.0
    %137 = vmatpush1.msra.mxu0 0.0
    %138 = vmatprep.subr.mxu0 0.0
    %139 = vmatpush1.msra.mxu0 0.0
    %140 = vmatprep.subr.mxu0 0.0
    %141 = vmatpush1.msra.mxu0 0.0
    %142 = vmatprep.subr.mxu0 0.0
    %143 = vmatpush1.msra.mxu0 0.0
    %144 = vmatprep.subr.mxu0 0.0
    %145 = vmatpush1.msra.mxu0 0.0
    %146 = vmatprep.subr.mxu0 0.0
    %147 = vmatpush1.msra.mxu0 0.0
    %148 = vmatprep.subr.mxu0 0.0
    %149 = vmatpush1.msra.mxu0 0.0
    %150 = vmatprep.subr.mxu0 0.0
    %151 = vmatpush1.msra.mxu0 0.0
    %152 = vmatprep.mubr.f32.mxu0 0.0
    %153 = vmatmul.mubr.f32.gmra.mrb[0].mxu0 %v86
    %v154 = vpop.f32.mrb[0].mxu0
    %v155 = vadd.f32 0.0, %v154
    %v156 = vpop.f32.mrb[0].mxu0
    %157 = vdwg.mxu0
    %v158 = vrot.slane %v155, 4
    %v159 = vadd.f32 %v155, %v158
    %v160 = vrot.slane %v159, 2
    %v161 = vadd.f32 %v159, %v160
    %v162 = vrot.slane %v161, 1
    %v163 = vadd.f32 %v161, %v162
    %v164 = vmul.f32 %v155, %v155
    %v165 = vrot.slane %v164, 4
    %v166 = vadd.f32 %v164, %v165
    %v167 = vrot.slane %v166, 2
    %v168 = vadd.f32 %v166, %v167
    %v169 = vrot.slane %v168, 1
    %v170 = vadd.f32 %v168, %v169
    %v171 = vmul.f32 %v163, 0.125
    %v172 = vmul.f32 %v170, 0.125
    %v173 = vmul.f32 %v171, %v171
    %v174 = vsub.f32 %v172, %v173
    %v175 = vmax.f32 %v174, 0.0
    %v176 = vld [vmem:[%s2] sm:$0x1]
    %v177 = vadd.f32 %v175, 1e-05
    %v178 = vrsqrt.pop %v177
    %v179 = vmul.f32 %v176, %v178
    %v180 = vld [vmem:[%s2 + $0x1] sm:$0x1]
    %v181 = vmul.f32 %v171, %v179
    %v182 = vsub.f32 %v180, %v181
    %v183 = vlaneseq
    %v184 = vshrl.u32 %v183, 7
    %v185 = vsub.s32 0, %v184
    %v186 = vrot.slane %v179, %v185
    %v187 = vmul.f32 %v155, %v186
    %v188 = vlaneseq
    %v189 = vshrl.u32 %v188, 7
    %v190 = vsub.s32 0, %v189
    %v191 = vrot.slane %v182, %v190
    %v192 = vadd.f32 %v187, %v191
    %v193 = vmax.f32 %v192, 0.0
    %v194 = vld [vmem:[#allocation6] sm:$0xff]
    %v195 = vld [vmem:[#allocation6 + $0x8] sm:$0xff]
    %v196 = vld [vmem:[#allocation6 + $0x10] sm:$0xff]
    %v197 = vld [vmem:[#allocation6 + $0x18] sm:$0xff]
    %v198 = vld [vmem:[#allocation6 + $0x20] sm:$0xff]
    %v199 = vld [vmem:[#allocation6 + $0x28] sm:$0xff]
    %v200 = vld [vmem:[#allocation6 + $0x30] sm:$0xff]
    %v201 = vld [vmem:[#allocation6 + $0x38] sm:$0xff]
    %v202 = vld [vmem:[#allocation6 + $0x40] sm:$0xff]
    %v203 = vld [vmem:[#allocation6 + $0x48] sm:$0xff]
    %v204 = vld [vmem:[#allocation6 + $0x50] sm:$0xff]
    %v205 = vld [vmem:[#allocation6 + $0x58] sm:$0xff]
    %v206 = vld [vmem:[#allocation6 + $0x60] sm:$0xff]
    %v207 = vld [vmem:[#allocation6 + $0x68] sm:$0xff]
    %v208 = vld [vmem:[#allocation6 + $0x70] sm:$0xff]
    %v209 = vld [vmem:[#allocation6 + $0x78] sm:$0xff]
    %210 = vmatprep.subr.mxu0 0.0
    %211 = vmatpush1.msra.mxu0 %v194
    %212 = vmatprep.subr.mxu0 0.0
    %213 = vmatpush1.msra.mxu0 %v195
    %214 = vmatprep.subr.mxu0 0.0
    %215 = vmatpush1.msra.mxu0 %v196
    %216 = vmatprep.subr.mxu0 0.0
    %217 = vmatpush1.msra.mxu0 %v197
    %218 = vmatprep.subr.mxu0 0.0
    %219 = vmatpush1.msra.mxu0 %v198
    %220 = vmatprep.subr.mxu0 0.0
    %221 = vmatpush1.msra.mxu0 %v199
    %222 = vmatprep.subr.mxu0 0.0
    %223 = vmatpush1.msra.mxu0 %v200
    %224 = vmatprep.subr.mxu0 0.0
    %225 = vmatpush1.msra.mxu0 %v201
    %226 = vmatprep.subr.mxu0 0.0
    %227 = vmatpush1.msra.mxu0 %v202
    %228 = vmatprep.subr.mxu0 0.0
    %229 = vmatpush1.msra.mxu0 %v203
    %230 = vmatprep.subr.mxu0 0.0
    %231 = vmatpush1.msra.mxu0 %v204
    %232 = vmatprep.subr.mxu0 0.0
    %233 = vmatpush1.msra.mxu0 %v205
    %234 = vmatprep.subr.mxu0 0.0
    %235 = vmatpush1.msra.mxu0 %v206
    %236 = vmatprep.subr.mxu0 0.0
    %237 = vmatpush1.msra.mxu0 %v207
    %238 = vmatprep.subr.mxu0 0.0
    %239 = vmatpush1.msra.mxu0 %v208
    %240 = vmatprep.subr.mxu0 0.0
    %241 = vmatpush1.msra.mxu0 %v209
    %242 = vmatprep.subr.mxu0 0.0
    %243 = vmatpush1.msra.mxu0 0.0
    %244 = vmatprep.subr.mxu0 0.0
    %245 = vmatpush1.msra.mxu0 0.0
    %246 = vmatprep.subr.mxu0 0.0
    %247 = vmatpush1.msra.mxu0 0.0
    %248 = vmatprep.subr.mxu0 0.0
    %249 = vmatpush1.msra.mxu0 0.0
    %250 = vmatprep.subr.mxu0 0.0
    %251 = vmatpush1.msra.mxu0 0.0
    %252 = vmatprep.subr.mxu0 0.0
    %253 = vmatpush1.msra.mxu0 0.0
    %254 = vmatprep.subr.mxu0 0.0
    %255 = vmatpush1.msra.mxu0 0.0
    %256 = vmatprep.subr.mxu0 0.0
    %257 = vmatpush1.msra.mxu0 0.0
    %258 = vmatprep.subr.mxu0 0.0
    %259 = vmatpush1.msra.mxu0 0.0
    %260 = vmatprep.subr.mxu0 0.0
    %261 = vmatpush1.msra.mxu0 0.0
    %262 = vmatprep.subr.mxu0 0.0
    %263 = vmatpush1.msra.mxu0 0.0
    %264 = vmatprep.subr.mxu0 0.0
    %265 = vmatpush1.msra.mxu0 0.0
    %266 = vmatprep.subr.mxu0 0.0
    %267 = vmatpush1.msra.mxu0 0.0
    %268 = vmatprep.subr.mxu0 0.0
    %269 = vmatpush1.msra.mxu0 0.0
    %270 = vmatprep.subr.mxu0 0.0
    %271 = vmatpush1.msra.mxu0 0.0
    %272 = vmatprep.subr.mxu0 0.0
    %273 = vmatpush1.msra.mxu0 0.0
    %274 = vmatprep.mubr.f32.mxu0 0.0
    %275 = vmatmul.mubr.f32.gmra.mrb[0].mxu0 %v193
    %v276 = vpop.f32.mrb[0].mxu0
    %v277 = vadd.f32 0.0, %v276
    %v278 = vpop.f32.mrb[0].mxu0
    %279 = vdwg.mxu0
    %v280 = vrot.slane %v277, 4
    %v281 = vadd.f32 %v277, %v280
    %v282 = vrot.slane %v281, 2
    %v283 = vadd.f32 %v281, %v282
    %v284 = vrot.slane %v283, 1
    %v285 = vadd.f32 %v283, %v284
    %v286 = vmul.f32 %v277, %v277
    %v287 = vrot.slane %v286, 4
    %v288 = vadd.f32 %v286, %v287
    %v289 = vrot.slane %v288, 2
    %v290 = vadd.f32 %v288, %v289
    %v291 = vrot.slane %v290, 1
    %v292 = vadd.f32 %v290, %v291
    %v293 = vmul.f32 %v285, 0.125
    %v294 = vmul.f32 %v292, 0.125
    %v295 = vmul.f32 %v293, %v293
    %v296 = vsub.f32 %v294, %v295
    %v297 = vmax.f32 %v296, 0.0
    %v298 = vld [vmem:[%s4] sm:$0x1]
    %v299 = vadd.f32 %v297, 1e-05
    %v300 = vrsqrt.pop %v299
    %v301 = vmul.f32 %v298, %v300
    %v302 = vld [vmem:[%s4 + $0x1] sm:$0x1]
    %v303 = vmul.f32 %v293, %v301
    %v304 = vsub.f32 %v302, %v303
    %v305 = vlaneseq
    %v306 = vshrl.u32 %v305, 7
    %v307 = vsub.s32 0, %v306
    %v308 = vrot.slane %v301, %v307
    %v309 = vmul.f32 %v277, %v308
    %v310 = vlaneseq
    %v311 = vshrl.u32 %v310, 7
    %v312 = vsub.s32 0, %v311
    %v313 = vrot.slane %v304, %v312
    %v314 = vadd.f32 %v309, %v313
    %v315 = vmax.f32 %v314, 0.0
    %v316 = vld [vmem:[#allocation7] sm:$0xff]
    %v317 = vld [vmem:[#allocation7 + $0x8] sm:$0xff]
    %v318 = vld [vmem:[#allocation7 + $0x10] sm:$0xff]
    %v319 = vld [vmem:[#allocation7 + $0x18] sm:$0xff]
    %v320 = vld [vmem:[#allocation7 + $0x20] sm:$0xff]
    %v321 = vld [vmem:[#allocation7 + $0x28] sm:$0xff]
    %v322 = vld [vmem:[#allocation7 + $0x30] sm:$0xff]
    %v323 = vld [vmem:[#allocation7 + $0x38] sm:$0xff]
    %v324 = vld [vmem:[#allocation7 + $0x40] sm:$0xff]
    %v325 = vld [vmem:[#allocation7 + $0x48] sm:$0xff]
    %v326 = vld [vmem:[#allocation7 + $0x50] sm:$0xff]
    %v327 = vld [vmem:[#allocation7 + $0x58] sm:$0xff]
    %v328 = vld [vmem:[#allocation7 + $0x60] sm:$0xff]
    %v329 = vld [vmem:[#allocation7 + $0x68] sm:$0xff]
    %v330 = vld [vmem:[#allocation7 + $0x70] sm:$0xff]
    %v331 = vld [vmem:[#allocation7 + $0x78] sm:$0xff]
    %v332 = vld [vmem:[%s6] sm:$0x1]
    %v334 = vlaneseq
    %v335 = vshrl.u32 %v334, 7
    %v336 = vsub.s32 0, %v335
    %v337 = vrot.slane %v332, %v336
    %339 = vmatprep.subr.mxu0 0.0
    %340 = vmatpush1.msra.mxu0 %v316
    %341 = vmatprep.subr.mxu0 0.0
    %342 = vmatpush1.msra.mxu0 %v317
    %343 = vmatprep.subr.mxu0 0.0
    %344 = vmatpush1.msra.mxu0 %v318
    %345 = vmatprep.subr.mxu0 0.0
    %346 = vmatpush1.msra.mxu0 %v319
    %347 = vmatprep.subr.mxu0 0.0
    %348 = vmatpush1.msra.mxu0 %v320
    %349 = vmatprep.subr.mxu0 0.0
    %350 = vmatpush1.msra.mxu0 %v321
    %351 = vmatprep.subr.mxu0 0.0
    %352 = vmatpush1.msra.mxu0 %v322
    %353 = vmatprep.subr.mxu0 0.0
    %354 = vmatpush1.msra.mxu0 %v323
    %355 = vmatprep.subr.mxu0 0.0
    %356 = vmatpush1.msra.mxu0 %v324
    %357 = vmatprep.subr.mxu0 0.0
    %358 = vmatpush1.msra.mxu0 %v325
    %359 = vmatprep.subr.mxu0 0.0
    %360 = vmatpush1.msra.mxu0 %v326
    %361 = vmatprep.subr.mxu0 0.0
    %362 = vmatpush1.msra.mxu0 %v327
    %363 = vmatprep.subr.mxu0 0.0
    %364 = vmatpush1.msra.mxu0 %v328
    %365 = vmatprep.subr.mxu0 0.0
    %366 = vmatpush1.msra.mxu0 %v329
    %367 = vmatprep.subr.mxu0 0.0
    %368 = vmatpush1.msra.mxu0 %v330
    %369 = vmatprep.subr.mxu0 0.0
    %370 = vmatpush1.msra.mxu0 %v331
    %371 = vmatprep.subr.mxu0 0.0
    %372 = vmatpush1.msra.mxu0 0.0
    %373 = vmatprep.subr.mxu0 0.0
    %374 = vmatpush1.msra.mxu0 0.0
    %375 = vmatprep.subr.mxu0 0.0
    %376 = vmatpush1.msra.mxu0 0.0
    %377 = vmatprep.subr.mxu0 0.0
    %378 = vmatpush1.msra.mxu0 0.0
    %379 = vmatprep.subr.mxu0 0.0
    %380 = vmatpush1.msra.mxu0 0.0
    %381 = vmatprep.subr.mxu0 0.0
    %382 = vmatpush1.msra.mxu0 0.0
    %383 = vmatprep.subr.mxu0 0.0
    %384 = vmatpush1.msra.mxu0 0.0
    %385 = vmatprep.subr.mxu0 0.0
    %386 = vmatpush1.msra.mxu0 0.0
    %387 = vmatprep.subr.mxu0 0.0
    %388 = vmatpush1.msra.mxu0 0.0
    %389 = vmatprep.subr.mxu0 0.0
    %390 = vmatpush1.msra.mxu0 0.0
    %391 = vmatprep.subr.mxu0 0.0
    %392 = vmatpush1.msra.mxu0 0.0
    %393 = vmatprep.subr.mxu0 0.0
    %394 = vmatpush1.msra.mxu0 0.0
    %395 = vmatprep.subr.mxu0 0.0
    %396 = vmatpush1.msra.mxu0 0.0
    %397 = vmatprep.subr.mxu0 0.0
    %398 = vmatpush1.msra.mxu0 0.0
    %399 = vmatprep.subr.mxu0 0.0
    %400 = vmatpush1.msra.mxu0 0.0
    %401 = vmatprep.subr.mxu0 0.0
    %402 = vmatpush1.msra.mxu0 0.0
    %403 = vmatprep.mubr.f32.mxu0 0.0
    %404 = vmatmul.mubr.f32.gmra.mrb[0].mxu0 %v315
    %v405 = vpop.f32.mrb[0].mxu0
    %v406 = vadd.f32 %v337, %v405
    %v407 = vpop.f32.mrb[0].mxu0
    %408 = vdwg.mxu0
    %409 = vst [vmem:[%s7] sm:$0xff] %v406
    // Predicated region
    $region46: #{encoder_forward.1} parent=1 // pred_check
      _
    $region47: #{encoder_forward.1} parent=1 // pred_check_branch
      %411 = sbr.rel (0) target = $region49
    $region48: #{encoder_forward.1} parent=1 // pred_region
      _
    $region49: #{encoder_forward.1} parent=1 // pred_fallthru
      _
    // Predicated region
    $region50: #{encoder_forward.1} parent=1 // pred_check
      _
    $region51: #{encoder_forward.1} parent=1 // pred_check_branch
      %413 = sbr.rel (0) target = $region53
    $region52: #{encoder_forward.1} parent=1 // pred_region
      _
    $region53: #{encoder_forward.1} parent=1 // pred_fallthru
      _
    %414 = vsyncpa [#allocation3], 1
    %415 = vsyncpa [#allocation5], 1
    %416 = vsyncpa [#allocation8], 1

</llo_original>
